<compile_context>
chip_gen: v6e
topology: v6e:2x2x1
jax: 0.10.0
libtpu: 0.0.40
codegen_flags: <defaults>
</compile_context>

<pallas_src>
import functools
import math

import jax
import jax.numpy as jnp
from jax.experimental import pallas as pl
from jax.experimental.pallas import tpu as pltpu

DIM = 64
NUM_HEADS = 4
D_HEAD = DIM // NUM_HEADS


# ---------------------------------------------------------------------------
# Kernel: fused multi-head self-attention block with cached Q/K/V projections
# ---------------------------------------------------------------------------
def _attn_kernel(x_ref, wqkv_ref, wo_ref, o_ref, q_s, k_s, v_s, *,
                 num_heads, n_valid):
    """One (batch, query-row-tile) step.

    x_ref   : (1, n_pad, D)  full padded sequence (resident across tiles)
    wqkv_ref: (D, 3D)        concat[scaled-q, k, v] projection weights
    wo_ref  : (D, D)         output projection
    o_ref   : (1, tm, D)
    q_s/k_s/v_s : (n_pad, D) VMEM caches, written once per batch element
    """
    n_pad, d = q_s.shape
    tm = o_ref.shape[1]
    dh = d // num_heads
    mxu_dtype = q_s.dtype
    i = pl.program_id(1)

    # Project the whole sequence once per batch element; cache in VMEM.
    @pl.when(i == 0)
    def _project():
        xf = x_ref[0].astype(mxu_dtype)                                # (n_pad, D)
        qkv = jnp.dot(xf, wqkv_ref[...],
                      preferred_element_type=jnp.float32)              # (n_pad, 3D)
        q_s[...] = qkv[:, 0:d].astype(mxu_dtype)
        k_s[...] = qkv[:, d:2 * d].astype(mxu_dtype)
        v_s[...] = qkv[:, 2 * d:3 * d].astype(mxu_dtype)

    start = pl.multiple_of(i * tm, 8)
    q = q_s[pl.ds(start, tm), :]                                       # (tm, D)
    k = k_s[...]                                                       # (n_pad, D)
    v = v_s[...]                                                       # (n_pad, D)

    # Heads as a batch dimension (no 16-lane slices, no unrolled head loop).
    qh = jnp.transpose(q.reshape(tm, num_heads, dh), (1, 0, 2))        # (H, tm, dh)
    kh = jnp.transpose(k.reshape(n_pad, num_heads, dh), (1, 0, 2))     # (H, n_pad, dh)
    vh = jnp.transpose(v.reshape(n_pad, num_heads, dh), (1, 0, 2))     # (H, n_pad, dh)

    # scores; 1/sqrt(dh) already folded into wq.
    s = jnp.einsum('hmd,hnd->hmn', qh, kh,
                   preferred_element_type=jnp.float32)                 # (H, tm, n_pad)

    if n_pad > n_valid:  # static: mask padded key columns
        kid = jax.lax.broadcasted_iota(jnp.int32, (1, 1, n_pad), 2)
        s = jnp.where(kid < n_valid, s, -1e30)

    # Numerically stable softmax with DEFERRED normalization.
    s = s - jnp.max(s, axis=-1, keepdims=True)
    p = jnp.exp(s)                                                     # (H, tm, n_pad)
    l = jnp.sum(p, axis=-1, keepdims=True)                             # (H, tm, 1)

    pv = jnp.einsum('hmn,hnd->hmd', p.astype(mxu_dtype), vh,
                    preferred_element_type=jnp.float32)                # (H, tm, dh)
    ctx = pv * pl.reciprocal(l, approx=True)                           # (H, tm, dh)

    # Merge heads and apply the output projection (full 64-deep contraction).
    ctx2 = jnp.transpose(ctx, (1, 0, 2)).reshape(tm, d)                # (tm, D)
    y = jnp.dot(ctx2.astype(mxu_dtype), wo_ref[...],
                preferred_element_type=jnp.float32)                    # (tm, D)
    o_ref[0] = y.astype(o_ref.dtype)
    # TODO(synk): optional lane-dense output reshape (tm,64)->(tm/2,128) and a
    # per-tile "parallel" axis for B==1 on v7x are left unexplored (A/B them).


# ---------------------------------------------------------------------------
# Wrapper
# ---------------------------------------------------------------------------
def _round_up(x, m):
    return -(-x // m) * m


@functools.partial(jax.jit, static_argnames=("num_heads", "tile", "mxu_dtype"))
def attention_block(x, params, *, num_heads=NUM_HEADS, tile=256,
                    mxu_dtype=jnp.float32):
    """x: (B, N, D) float32 -> (B, N, D). Matches SimpleAttentionBlock.forward."""
    B, N, D = x.shape
    assert D % num_heads == 0, "dim must be divisible by num_heads"
    scale = 1.0 / math.sqrt(D // num_heads)

    # Query-row tile: multiple of 8, capped by `tile` (keep modest for v7x's
    # 64 MiB VMEM); pad the sequence to a multiple of tm.
    tm = max(8, (min(tile, _round_up(N, 8)) // 8) * 8)
    n_pad = _round_up(N, tm)
    x_p = x if n_pad == N else jnp.pad(x, ((0, 0), (0, n_pad - N), (0, 0)))

    # Fold the softmax scale into wq; fuse Q/K/V into one lane-dense (D,3D) weight.
    wqkv = jnp.concatenate(
        [params["wq"] * scale, params["wk"], params["wv"]], axis=1
    ).astype(mxu_dtype)                                   # (D, 3D) = (64, 192)
    wo = params["wo"].astype(mxu_dtype)                   # (D, D)

    kernel = functools.partial(_attn_kernel, num_heads=num_heads, n_valid=N)

    out = pl.pallas_call(
        kernel,
        out_shape=jax.ShapeDtypeStruct((B, n_pad, D), x.dtype),
        grid_spec=pltpu.PrefetchScalarGridSpec(
            num_scalar_prefetch=0,
            grid=(B, n_pad // tm),
            in_specs=[
                # x passed ONCE: full padded sequence, resident across tiles.
                pl.BlockSpec((1, n_pad, D), lambda b, i: (b, 0, 0)),
                pl.BlockSpec((D, 3 * D), lambda b, i: (0, 0)),
                pl.BlockSpec((D, D), lambda b, i: (0, 0)),
            ],
            out_specs=pl.BlockSpec((1, tm, D), lambda b, i: (b, i, 0)),
            scratch_shapes=[
                pltpu.VMEM((n_pad, D), mxu_dtype),   # Q cache
                pltpu.VMEM((n_pad, D), mxu_dtype),   # K cache
                pltpu.VMEM((n_pad, D), mxu_dtype),   # V cache
            ],
        ),
        compiler_params=pltpu.CompilerParams(
            # Query-tile axis must be "arbitrary" so the Q/K/V caches legally
            # persist across tiles of the same batch element; batch stays
            # "parallel" for megacore sharding when B > 1.
            dimension_semantics=("parallel", "arbitrary"),
            vmem_limit_bytes=32 * 1024 * 1024,
        ),
    )(x_p, wqkv, wo)

    return out[:, :N, :]


# ---------------------------------------------------------------------------
# Deterministic parameter init (nn.Linear(bias=False), uniform(-1/sqrt(in), .))
# Weights stored pre-transposed: (in, out).
# ---------------------------------------------------------------------------
def init_params(key, dim=DIM):
    bound = 1.0 / math.sqrt(dim)
    kq, kk, kv, ko = jax.random.split(key, 4)
    mk = lambda k: jax.random.uniform(k, (dim, dim), jnp.float32, -bound, bound)
    return dict(wq=mk(kq), wk=mk(kk), wv=mk(kv), wo=mk(ko))


# ---------------------------------------------------------------------------
# Plain-JAX reference (mirrors the PyTorch forward) for correctness checks
# ---------------------------------------------------------------------------
def ref_attention(x, p, num_heads=NUM_HEADS):
    B, N, D = x.shape
    dh = D // num_heads
    q = (x @ p["wq"]).reshape(B, N, num_heads, dh).transpose(0, 2, 1, 3)
    k = (x @ p["wk"]).reshape(B, N, num_heads, dh).transpose(0, 2, 1, 3)
    v = (x @ p["wv"]).reshape(B, N, num_heads, dh).transpose(0, 2, 1, 3)
    s = jnp.einsum("bhqd,bhkd->bhqk", q, k) / math.sqrt(dh)
    a = jax.nn.softmax(s, axis=-1)
    o = jnp.einsum("bhqk,bhkd->bhqd", a, v)
    o = o.transpose(0, 2, 1, 3).reshape(B, N, D)
    return o @ p["wo"]


if __name__ == "__main__":
    key = jax.random.PRNGKey(0)
    kp, kx1, kx2 = jax.random.split(key, 3)
    params = init_params(kp)

    # Shapes per the module docstring: batch=1, seq_len=8, dim=64, heads=4.
    x = jax.random.normal(kx1, (1, 8, DIM), jnp.float32)
    y = attention_block(x, params)
    jax.block_until_ready(y)
    y_ref = ref_attention(x, params)
    # Tolerance accounts for the approx EUP reciprocal in the deferred softmax
    # normalization (algorithmic errors would be O(1)).
    assert y.shape == y_ref.shape
    assert jnp.allclose(y, y_ref, atol=1e-2, rtol=1e-2), "mismatch (N=8, f32)"

    # Multi-tile path: KV cache reused across query tiles, padded keys masked.
    x2 = jax.random.normal(kx2, (1, 37, DIM), jnp.float32)
    y2 = attention_block(x2, params, tile=16)
    jax.block_until_ready(y2)
    y2_ref = ref_attention(x2, params)
    assert jnp.allclose(y2, y2_ref, atol=1e-2, rtol=1e-2), "mismatch (N=37, f32)"

    # bf16 MXU operands (softmax math stays f32) — looser tolerance.
    y3 = attention_block(x2, params, tile=16, mxu_dtype=jnp.bfloat16)
    jax.block_until_ready(y3)
    assert jnp.allclose(y3, y2_ref, atol=5e-2, rtol=5e-2), "mismatch (bf16 MXU)"

    print("KERNEL_OK")
</pallas_src>

<mosaic_0001>
module attributes {stable_mosaic.version = 11 : i64} {
  func.func @_attn_kernel(%arg0: i32, %arg1: i32, %arg2: memref<1x8x64xf32, #tpu.memory_space<vmem>>, %arg3: memref<64x192xf32, #tpu.memory_space<vmem>>, %arg4: memref<64x64xf32, #tpu.memory_space<vmem>>, %arg5: memref<1x8x64xf32, #tpu.memory_space<vmem>>, %arg6: memref<8x64xf32, #tpu.memory_space<vmem>>, %arg7: memref<8x64xf32, #tpu.memory_space<vmem>>, %arg8: memref<8x64xf32, #tpu.memory_space<vmem>>) attributes {dimension_semantics = [#tpu.dimension_semantics<parallel>, #tpu.dimension_semantics<arbitrary>], iteration_bounds = array<i64: 1, 1>, scalar_prefetch = 0 : i64, scratch_operands = 3 : i64, tpu.core_type = #tpu.core_type<tc>, window_params = [{transform_indices = @transform_0, window_bounds = array<i64: 1, 8, 64>}, {pipeline_mode = #tpu.pipeline_mode<synchronous>, transform_indices = @transform_1, window_bounds = array<i64: 64, 192>}, {pipeline_mode = #tpu.pipeline_mode<synchronous>, transform_indices = @transform_2, window_bounds = array<i64: 64, 64>}, {transform_indices = @transform_3, window_bounds = array<i64: 1, 8, 64>}]} {
    %c0_i32 = arith.constant 0 : i32
    %0 = arith.cmpi eq, %arg1, %c0_i32 : i32
    %1 = arith.extui %0 : i1 to i32
    %c0_i32_0 = arith.constant 0 : i32
    %2 = arith.cmpi ne, %1, %c0_i32_0 : i32
    scf.if %2 {
      %c0_14 = arith.constant 0 : index
      %c0_15 = arith.constant 0 : index
      %c0_16 = arith.constant 0 : index
      %34 = vector.load %arg2[%c0_14, %c0_15, %c0_16] : memref<1x8x64xf32, #tpu.memory_space<vmem>>, vector<1x8x64xf32>
      %35 = vector.shape_cast %34 : vector<1x8x64xf32> to vector<8x64xf32>
      %c0_17 = arith.constant 0 : index
      %c0_18 = arith.constant 0 : index
      %36 = vector.load %arg3[%c0_17, %c0_18] : memref<64x192xf32, #tpu.memory_space<vmem>>, vector<64x192xf32>
      %cst_19 = arith.constant dense<0.000000e+00> : vector<8x192xf32>
      %37 = tpu.matmul %35, %36, %cst_19 {dimension_numbers = #tpu.dot_dimension_numbers<[1], [0], [0], [1], [0, 0, 1, 1], [], []>} : vector<8x64xf32>, vector<64x192xf32>, vector<8x192xf32> -> vector<8x192xf32>
      %38 = vector.extract_strided_slice %37 {offsets = [0, 0], sizes = [8, 64], strides = [1, 1]} : vector<8x192xf32> to vector<8x64xf32>
      %c0_20 = arith.constant 0 : index
      %c0_21 = arith.constant 0 : index
      %39 = vector.load %arg6[%c0_20, %c0_21] : memref<8x64xf32, #tpu.memory_space<vmem>>, vector<8x64xf32>
      tpu.vector_store %arg6[%c0_20, %c0_21], %38 {strides = array<i32>} : memref<8x64xf32, #tpu.memory_space<vmem>>, vector<8x64xf32>,
      %40 = vector.extract_strided_slice %37 {offsets = [0, 64], sizes = [8, 64], strides = [1, 1]} : vector<8x192xf32> to vector<8x64xf32>
      %c0_22 = arith.constant 0 : index
      %c0_23 = arith.constant 0 : index
      %41 = vector.load %arg7[%c0_22, %c0_23] : memref<8x64xf32, #tpu.memory_space<vmem>>, vector<8x64xf32>
      tpu.vector_store %arg7[%c0_22, %c0_23], %40 {strides = array<i32>} : memref<8x64xf32, #tpu.memory_space<vmem>>, vector<8x64xf32>,
      %42 = vector.extract_strided_slice %37 {offsets = [0, 128], sizes = [8, 64], strides = [1, 1]} : vector<8x192xf32> to vector<8x64xf32>
      %c0_24 = arith.constant 0 : index
      %c0_25 = arith.constant 0 : index
      %43 = vector.load %arg8[%c0_24, %c0_25] : memref<8x64xf32, #tpu.memory_space<vmem>>, vector<8x64xf32>
      tpu.vector_store %arg8[%c0_24, %c0_25], %42 {strides = array<i32>} : memref<8x64xf32, #tpu.memory_space<vmem>>, vector<8x64xf32>,
    } else {
    }
    %c8_i32 = arith.constant 8 : i32
    %3 = arith.muli %arg1, %c8_i32 : i32
    %4 = tpu.assume_multiple %3, 8 : i32
    %5 = arith.index_cast %4 : i32 to index
    %c0 = arith.constant 0 : index
    %6 = vector.load %arg6[%5, %c0] : memref<8x64xf32, #tpu.memory_space<vmem>>, vector<8x64xf32>
    %c0_1 = arith.constant 0 : index
    %c0_2 = arith.constant 0 : index
    %7 = vector.load %arg7[%c0_1, %c0_2] : memref<8x64xf32, #tpu.memory_space<vmem>>, vector<8x64xf32>
    %c0_3 = arith.constant 0 : index
    %c0_4 = arith.constant 0 : index
    %8 = vector.load %arg8[%c0_3, %c0_4] : memref<8x64xf32, #tpu.memory_space<vmem>>, vector<8x64xf32>
    %9 = vector.shape_cast %6 : vector<8x64xf32> to vector<8x4x16xf32>
    %10 = tpu.transpose %9, [1, 0, 2] : vector<8x4x16xf32> -> vector<4x8x16xf32>
    %11 = vector.shape_cast %7 : vector<8x64xf32> to vector<8x4x16xf32>
    %12 = tpu.transpose %11, [1, 0, 2] : vector<8x4x16xf32> -> vector<4x8x16xf32>
    %13 = vector.shape_cast %8 : vector<8x64xf32> to vector<8x4x16xf32>
    %14 = tpu.transpose %13, [1, 0, 2] : vector<8x4x16xf32> -> vector<4x8x16xf32>
    "tpu.trace_start"() <{level = 10 : i32, message = "hmd,hnd->hmn"}> : () -> ()
    %cst = arith.constant dense<0.000000e+00> : vector<4x8x8xf32>
    %15 = tpu.matmul %10, %12, %cst {dimension_numbers = #tpu.dot_dimension_numbers<[2], [2], [1], [1], [0, 0, 0, 1, 1, 1], [0], [0]>} : vector<4x8x16xf32>, vector<4x8x16xf32>, vector<4x8x8xf32> -> vector<4x8x8xf32>
    "tpu.trace_stop"() : () -> ()
    %cst_5 = arith.constant dense<0xFF800000> : vector<4x8xf32>
    %16 = vector.multi_reduction <maximumf>, %15, %cst_5 [2] : vector<4x8x8xf32> to vector<4x8xf32>
    %17 = vector.shape_cast %16 : vector<4x8xf32> to vector<4x8x1xf32>
    %18 = vector.broadcast %17 : vector<4x8x1xf32> to vector<4x8x8xf32>
    %19 = arith.subf %15, %18 : vector<4x8x8xf32>
    %20 = math.exp %19 : vector<4x8x8xf32>
    %cst_6 = arith.constant dense<0.000000e+00> : vector<4x8xf32>
    %21 = vector.multi_reduction <add>, %20, %cst_6 [2] : vector<4x8x8xf32> to vector<4x8xf32>
    %22 = vector.shape_cast %21 : vector<4x8xf32> to vector<4x8x1xf32>
    "tpu.trace_start"() <{level = 10 : i32, message = "hmn,hnd->hmd"}> : () -> ()
    %cst_7 = arith.constant dense<0.000000e+00> : vector<4x8x16xf32>
    %23 = tpu.matmul %20, %14, %cst_7 {dimension_numbers = #tpu.dot_dimension_numbers<[2], [1], [1], [2], [0, 0, 0, 1, 1, 2], [0], [0]>} : vector<4x8x8xf32>, vector<4x8x16xf32>, vector<4x8x16xf32> -> vector<4x8x16xf32>
    "tpu.trace_stop"() : () -> ()
    %24 = tpu.reciprocal %22 {approx = true} : vector<4x8x1xf32> -> vector<4x8x1xf32>
    %25 = vector.broadcast %24 : vector<4x8x1xf32> to vector<4x8x16xf32>
    %26 = arith.mulf %23, %25 : vector<4x8x16xf32>
    %27 = tpu.transpose %26, [1, 0, 2] : vector<4x8x16xf32> -> vector<8x4x16xf32>
    %28 = vector.shape_cast %27 : vector<8x4x16xf32> to vector<8x64xf32>
    %c0_8 = arith.constant 0 : index
    %c0_9 = arith.constant 0 : index
    %29 = vector.load %arg4[%c0_8, %c0_9] : memref<64x64xf32, #tpu.memory_space<vmem>>, vector<64x64xf32>
    %cst_10 = arith.constant dense<0.000000e+00> : vector<8x64xf32>
    %30 = tpu.matmul %28, %29, %cst_10 {dimension_numbers = #tpu.dot_dimension_numbers<[1], [0], [0], [1], [0, 0, 1, 1], [], []>} : vector<8x64xf32>, vector<64x64xf32>, vector<8x64xf32> -> vector<8x64xf32>
    %c0_11 = arith.constant 0 : index
    %c0_12 = arith.constant 0 : index
    %c0_13 = arith.constant 0 : index
    %31 = vector.load %arg5[%c0_11, %c0_12, %c0_13] : memref<1x8x64xf32, #tpu.memory_space<vmem>>, vector<1x8x64xf32>
    %32 = vector.shape_cast %31 : vector<1x8x64xf32> to vector<8x64xf32>
    %33 = vector.shape_cast %30 : vector<8x64xf32> to vector<1x8x64xf32>
    tpu.vector_store %arg5[%c0_11, %c0_12, %c0_13], %33 {strides = array<i32>} : memref<1x8x64xf32, #tpu.memory_space<vmem>>, vector<1x8x64xf32>,
    return
  }
  func.func @transform_0(%arg0: i32, %arg1: i32) -> (i32, i32, i32) {
    %c0_i32 = arith.constant 0 : i32
    %c0_i32_0 = arith.constant 0 : i32
    %c0_i32_1 = arith.constant 0 : i32
    return %arg0, %c0_i32, %c0_i32_0 : i32, i32, i32
  }
  func.func @transform_1(%arg0: i32, %arg1: i32) -> (i32, i32) {
    %c0_i32 = arith.constant 0 : i32
    %c0_i32_0 = arith.constant 0 : i32
    %c0_i32_1 = arith.constant 0 : i32
    return %c0_i32, %c0_i32_0 : i32, i32
  }
  func.func @transform_2(%arg0: i32, %arg1: i32) -> (i32, i32) {
    %c0_i32 = arith.constant 0 : i32
    %c0_i32_0 = arith.constant 0 : i32
    %c0_i32_1 = arith.constant 0 : i32
    return %c0_i32, %c0_i32_0 : i32, i32
  }
  func.func @transform_3(%arg0: i32, %arg1: i32) -> (i32, i32, i32) {
    %c0_i32 = arith.constant 0 : i32
    %c0_i32_0 = arith.constant 0 : i32
    return %arg0, %arg1, %c0_i32 : i32, i32, i32
  }
}

</mosaic_0001>

<llo_original>
// kernel: attention_block.1
$region0: #{attention_block.1}
  #allocation0 [shape = 'u32[]', space=smem, size = 0x4, offset = 0x4, fixed_abs, tag = 'smem constant byte address 0x4 - core index']
  #allocation1 [shape = 'u32[144,128]{1,0:T(1,128)}', space=vmem, size = 0x12000, scoped, tag = 'internal scratch']
  #allocation2 [shape = 'f32[8,64]{1,0:T(8,128)}', space=vmem, size = 0x1000, scoped, tag = 'scratch operand']
  #allocation3 [shape = 'f32[8,64]{1,0:T(8,128)}', space=vmem, size = 0x1000, scoped, tag = 'scratch operand']
  #allocation4 [shape = 'f32[8,64]{1,0:T(8,128)}', space=vmem, size = 0x1000, scoped, tag = 'scratch operand']
  %s0 = inlined_call_operand.vmem [shape: f32[1,8,64], index: 0, kind: input, shape index: {}]
  %s1 = inlined_call_operand.vmem [shape: f32[64,192], index: 1, kind: input, shape index: {}]
  %s2 = inlined_call_operand.vmem [shape: f32[64,64], index: 2, kind: input, shape index: {}]
  %s3 = inlined_call_operand.hbm [shape: f32[1,8,64], index: 3, kind: output, shape index: {}]
  %s4 = sld [smem:[#allocation0]]
  $region26: #{attention_block.1} parent=0
    _
  %s6 = ssub.s32 1, %s4
  %s7 = scalar_select 0, %s6, %s4
  $region1: #{attention_block.1} parent=0
    #allocation5 [shape = 'u8[4096]{0}', space=vmem, size = 0x1000, scoped, tag = 'output window, operand 0, single buffered']
    #allocation6 [shape = 's32[1]{0}', space=sflag, size = 0x4, scoped, tag = 'scoped memory for attention_block.1']
    %8 = vsyncpa [#allocation6], 0
    // Predicated region
    $region2: #{attention_block.1} parent=1 // pred_check
      _
    $region3: #{attention_block.1} parent=1 // pred_check_branch
      %10 = sbr.rel (0) target = $region5
    $region4: #{attention_block.1} parent=1 // pred_region
      _
    $region5: #{attention_block.1} parent=1 // pred_fallthru
      _
    // Predicated region
    $region6: #{attention_block.1} parent=1 // pred_check
      _
    $region7: #{attention_block.1} parent=1 // pred_check_branch
      %12 = sbr.rel (0) target = $region9
    $region8: #{attention_block.1} parent=1 // pred_region
      _
    $region9: #{attention_block.1} parent=1 // pred_fallthru
      _
    // Predicated region
    $region10: #{attention_block.1} parent=1 // pred_check
      _
    $region11: #{attention_block.1} parent=1 // pred_check_branch
      %14 = sbr.rel (0) target = $region13
    $region12: #{attention_block.1} parent=1 // pred_region
      _
    $region13: #{attention_block.1} parent=1 // pred_fallthru
      _
    %p15 = scmp.eq.s32.totalorder 0, 0
    // Predicated region
    $region14: #{attention_block.1} parent=1 // pred_check
      %p16 = pneg %p15
    $region15: #{attention_block.1} parent=1 // pred_check_branch
      %18 = sbr.rel (%p16) target = $region17
    $region16: #{attention_block.1} parent=1 // pred_region
      %v19 = vld [vmem:[%s0] sm:$0xff]
      %v20 = vld [vmem:[%s1] sm:$0xff]
      %v21 = vld [vmem:[%s1 + $0x8] sm:$0xff]
      %v22 = vld [vmem:[%s1 + $0x10] sm:$0xff]
      %v23 = vld [vmem:[%s1 + $0x18] sm:$0xff]
      %v24 = vld [vmem:[%s1 + $0x20] sm:$0xff]
      %v25 = vld [vmem:[%s1 + $0x28] sm:$0xff]
      %v26 = vld [vmem:[%s1 + $0x30] sm:$0xff]
      %v27 = vld [vmem:[%s1 + $0x38] sm:$0xff]
      %v28 = vld [vmem:[%s1 + $0x40] sm:$0xff]
      %v29 = vld [vmem:[%s1 + $0x48] sm:$0xff]
      %v30 = vld [vmem:[%s1 + $0x50] sm:$0xff]
      %v31 = vld [vmem:[%s1 + $0x58] sm:$0xff]
      %v32 = vld [vmem:[%s1 + $0x60] sm:$0xff]
      %v33 = vld [vmem:[%s1 + $0x68] sm:$0xff]
      %v34 = vld [vmem:[%s1 + $0x70] sm:$0xff]
      %v35 = vld [vmem:[%s1 + $0x78] sm:$0xff]
      %vm36 = vcmask 523264
      %v38 = vsel %vm36, %v19, 0
      %40 = vmatprep.subr.mxu0 0.0
      %41 = vmatpush1.msra.mxu0 0.0
      %42 = vmatprep.subr.mxu0 0.0
      %43 = vmatpush1.msra.mxu0 0.0
      %44 = vmatprep.subr.mxu0 0.0
      %45 = vmatpush1.msra.mxu0 0.0
      %46 = vmatprep.subr.mxu0 0.0
      %47 = vmatpush1.msra.mxu0 0.0
      %48 = vmatprep.subr.mxu0 0.0
      %49 = vmatpush1.msra.mxu0 0.0
      %50 = vmatprep.subr.mxu0 0.0
      %51 = vmatpush1.msra.mxu0 0.0
      %52 = vmatprep.subr.mxu0 0.0
      %53 = vmatpush1.msra.mxu0 0.0
      %54 = vmatprep.subr.mxu0 0.0
      %55 = vmatpush1.msra.mxu0 0.0
      %56 = vmatprep.subr.mxu0 %v35
      %57 = vmatpush1.msra.mxu0 %v34
      %58 = vmatprep.subr.mxu0 %v33
      %59 = vmatpush1.msra.mxu0 %v32
      %60 = vmatprep.subr.mxu0 %v31
      %61 = vmatpush1.msra.mxu0 %v30
      %62 = vmatprep.subr.mxu0 %v29
      %63 = vmatpush1.msra.mxu0 %v28
      %64 = vmatprep.subr.mxu0 %v27
      %65 = vmatpush1.msra.mxu0 %v26
      %66 = vmatprep.subr.mxu0 %v25
      %67 = vmatpush1.msra.mxu0 %v24
      %68 = vmatprep.subr.mxu0 %v23
      %69 = vmatpush1.msra.mxu0 %v22
      %70 = vmatprep.subr.mxu0 %v21
      %71 = vmatpush1.msra.mxu0 %v20
      %72 = vmatprep.subr.mxu0 0.0
      %73 = vmatpush2.msra.mxu0 0.0
      %74 = vmatprep.subr.mxu0 0.0
      %75 = vmatpush2.msra.mxu0 0.0
      %76 = vmatprep.subr.mxu0 0.0
      %77 = vmatpush2.msra.mxu0 0.0
      %78 = vmatprep.subr.mxu0 0.0
      %79 = vmatpush2.msra.mxu0 0.0
      %80 = vmatprep.subr.mxu0 0.0
      %81 = vmatpush2.msra.mxu0 0.0
      %82 = vmatprep.subr.mxu0 0.0
      %83 = vmatpush2.msra.mxu0 0.0
      %84 = vmatprep.subr.mxu0 0.0
      %85 = vmatpush2.msra.mxu0 0.0
      %86 = vmatprep.subr.mxu0 0.0
      %87 = vmatpush2.msra.mxu0 0.0
      %88 = vmatprep.subr.mxu0 0.0
      %89 = vmatpush2.msra.mxu0 0.0
      %90 = vmatprep.subr.mxu0 0.0
      %91 = vmatpush2.msra.mxu0 0.0
      %92 = vmatprep.subr.mxu0 0.0
      %93 = vmatpush2.msra.mxu0 0.0
      %94 = vmatprep.subr.mxu0 0.0
      %95 = vmatpush2.msra.mxu0 0.0
      %96 = vmatprep.subr.mxu0 0.0
      %97 = vmatpush2.msra.mxu0 0.0
      %98 = vmatprep.subr.mxu0 0.0
      %99 = vmatpush2.msra.mxu0 0.0
      %100 = vmatprep.subr.mxu0 0.0
      %101 = vmatpush2.msra.mxu0 0.0
      %102 = vmatprep.subr.mxu0 0.0
      %103 = vmatpush2.msra.mxu0 0.0
      %104 = vmatprep.mubr.f32.mxu0 0.0
      %105 = vmatmul.mubr.f32.gmra.mxu0 %v38
      %v106 = vpop.f32.mrf.mxu0
      %v107 = vadd.f32 0.0, %v106
      %v108 = vpop.f32.mrf.mxu0
      %v109 = vadd.f32 0.0, %v108
      %110 = vdwg.mxu0
      %111 = vst.msk [vmem:[#allocation2] sm:$0xff] %vm36, %v107
      %113 = vrot.lane.b32.xlu0 %v107, 64
      %v114 = vpop.permute.xlu0 %113
      %116 = vst.msk [vmem:[#allocation3] sm:$0xff] %vm36, %v114
      %117 = vst.msk [vmem:[#allocation4] sm:$0xff] %vm36, %v109
    $region17: #{attention_block.1} parent=1 // pred_fallthru
      _
    %s118 = smul.u32 0, 8
    %s119 = scalar_lea.vmem [#allocation2], %s118
    %v120 = vld [vmem:[%s119] sm:$0xff]
    %v121 = vld [vmem:[#allocation3] sm:$0xff]
    %v122 = vld [vmem:[#allocation4] sm:$0xff]
    %124 = vrot.lane.b32.xlu0 %v120, 112
    %v125 = vpop.permute.xlu0 %124
    %127 = vrot.lane.b32.xlu0 %v120, 96
    %v128 = vpop.permute.xlu0 %127
    %130 = vrot.lane.b32.xlu0 %v120, 80
    %v131 = vpop.permute.xlu0 %130
    %v133 = vcombine.low %v120, %v128
    %v134 = vcombine.high %v120, %v128
    %v136 = vunpack.c.l.s4 1983009808
    %v137 = vunpack.c.0.s8 %v136
    %v138 = vlaneseq
    %v139 = vshrl.u32 %v138, 7
    %v140 = vsub.s32 %v137, %v139
    %v141 = vrot.slane %v133, %v140
    %v143 = vunpack.c.l.s4 1983009808
    %v144 = vunpack.c.0.s8 %v143
    %v145 = vlaneseq
    %v146 = vshrl.u32 %v145, 7
    %v147 = vsub.s32 %v144, %v146
    %v148 = vrot.slane %v134, %v147
    %v149 = vcombine.low %v125, %v131
    %v150 = vcombine.high %v125, %v131
    %v152 = vunpack.c.l.s4 1983009808
    %v153 = vunpack.c.0.s8 %v152
    %v154 = vlaneseq
    %v155 = vshrl.u32 %v154, 7
    %v156 = vsub.s32 %v153, %v155
    %v157 = vrot.slane %v149, %v156
    %v159 = vunpack.c.l.s4 1983009808
    %v160 = vunpack.c.0.s8 %v159
    %v161 = vlaneseq
    %v162 = vshrl.u32 %v161, 7
    %v163 = vsub.s32 %v160, %v162
    %v164 = vrot.slane %v150, %v163
    %v165 = vcombine.low %v141, %v157
    %v166 = vcombine.high %v141, %v157
    %v168 = vunpack.c.l.s4 1934713408
    %v169 = vunpack.c.0.s8 %v168
    %v170 = vlaneseq
    %v171 = vshrl.u32 %v170, 7
    %v172 = vsub.s32 %v169, %v171
    %v173 = vrot.slane %v165, %v172
    %v175 = vunpack.c.l.s4 1934713408
    %v176 = vunpack.c.0.s8 %v175
    %v177 = vlaneseq
    %v178 = vshrl.u32 %v177, 7
    %v179 = vsub.s32 %v176, %v178
    %v180 = vrot.slane %v166, %v179
    %v181 = vcombine.low %v148, %v164
    %v182 = vcombine.high %v148, %v164
    %v184 = vunpack.c.l.s4 1934713408
    %v185 = vunpack.c.0.s8 %v184
    %v186 = vlaneseq
    %v187 = vshrl.u32 %v186, 7
    %v188 = vsub.s32 %v185, %v187
    %v189 = vrot.slane %v181, %v188
    %v191 = vunpack.c.l.s4 1934713408
    %v192 = vunpack.c.0.s8 %v191
    %v193 = vlaneseq
    %v194 = vshrl.u32 %v193, 7
    %v195 = vsub.s32 %v192, %v194
    %v196 = vrot.slane %v182, %v195
    %v197 = vcombine.high %v173, 0.0
    %v198 = vcombine.high %v180, 0.0
    %v199 = vcombine.high %v189, 0.0
    %v200 = vcombine.high %v196, 0.0
    %v201 = vcombine.low %v173, %v180
    %v203 = vunpack.c.l.s4 1983009808
    %v204 = vunpack.c.0.s8 %v203
    %v205 = vlaneseq
    %v206 = vshrl.u32 %v205, 7
    %v207 = vsub.s32 %v204, %v206
    %v208 = vrot.slane %v201, %v207
    %v209 = vcombine.low %v197, %v198
    %v211 = vunpack.c.l.s4 1983009808
    %v212 = vunpack.c.0.s8 %v211
    %v213 = vlaneseq
    %v214 = vshrl.u32 %v213, 7
    %v215 = vsub.s32 %v212, %v214
    %v216 = vrot.slane %v209, %v215
    %v217 = vcombine.low %v189, %v196
    %v219 = vunpack.c.l.s4 1983009808
    %v220 = vunpack.c.0.s8 %v219
    %v221 = vlaneseq
    %v222 = vshrl.u32 %v221, 7
    %v223 = vsub.s32 %v220, %v222
    %v224 = vrot.slane %v217, %v223
    %v225 = vcombine.low %v199, %v200
    %v227 = vunpack.c.l.s4 1983009808
    %v228 = vunpack.c.0.s8 %v227
    %v229 = vlaneseq
    %v230 = vshrl.u32 %v229, 7
    %v231 = vsub.s32 %v228, %v230
    %v232 = vrot.slane %v225, %v231
    %v233 = vcombine.low %v208, %v216
    %v234 = vcombine.high %v208, %v216
    %v236 = vunpack.c.l.s4 1934713408
    %v237 = vunpack.c.0.s8 %v236
    %v238 = vlaneseq
    %v239 = vshrl.u32 %v238, 7
    %v240 = vsub.s32 %v237, %v239
    %v241 = vrot.slane %v233, %v240
    %v243 = vunpack.c.l.s4 1934713408
    %v244 = vunpack.c.0.s8 %v243
    %v245 = vlaneseq
    %v246 = vshrl.u32 %v245, 7
    %v247 = vsub.s32 %v244, %v246
    %v248 = vrot.slane %v234, %v247
    %v249 = vcombine.low %v224, %v232
    %v250 = vcombine.high %v224, %v232
    %v252 = vunpack.c.l.s4 1934713408
    %v253 = vunpack.c.0.s8 %v252
    %v254 = vlaneseq
    %v255 = vshrl.u32 %v254, 7
    %v256 = vsub.s32 %v253, %v255
    %v257 = vrot.slane %v249, %v256
    %v259 = vunpack.c.l.s4 1934713408
    %v260 = vunpack.c.0.s8 %v259
    %v261 = vlaneseq
    %v262 = vshrl.u32 %v261, 7
    %v263 = vsub.s32 %v260, %v262
    %v264 = vrot.slane %v250, %v263
    %v265 = vcombine.low %v241, %v257
    %v266 = vcombine.high %v241, %v257
    %v267 = vcombine.low %v248, %v264
    %v268 = vcombine.high %v248, %v264
    %270 = vrot.lane.b32.xlu0 %v121, 112
    %v271 = vpop.permute.xlu0 %270
    %273 = vrot.lane.b32.xlu0 %v121, 96
    %v274 = vpop.permute.xlu0 %273
    %276 = vrot.lane.b32.xlu0 %v121, 80
    %v277 = vpop.permute.xlu0 %276
    %v279 = vcombine.low %v121, %v274
    %v280 = vcombine.high %v121, %v274
    %v282 = vunpack.c.l.s4 1983009808
    %v283 = vunpack.c.0.s8 %v282
    %v284 = vlaneseq
    %v285 = vshrl.u32 %v284, 7
    %v286 = vsub.s32 %v283, %v285
    %v287 = vrot.slane %v279, %v286
    %v289 = vunpack.c.l.s4 1983009808
    %v290 = vunpack.c.0.s8 %v289
    %v291 = vlaneseq
    %v292 = vshrl.u32 %v291, 7
    %v293 = vsub.s32 %v290, %v292
    %v294 = vrot.slane %v280, %v293
    %v295 = vcombine.low %v271, %v277
    %v296 = vcombine.high %v271, %v277
    %v298 = vunpack.c.l.s4 1983009808
    %v299 = vunpack.c.0.s8 %v298
    %v300 = vlaneseq
    %v301 = vshrl.u32 %v300, 7
    %v302 = vsub.s32 %v299, %v301
    %v303 = vrot.slane %v295, %v302
    %v305 = vunpack.c.l.s4 1983009808
    %v306 = vunpack.c.0.s8 %v305
    %v307 = vlaneseq
    %v308 = vshrl.u32 %v307, 7
    %v309 = vsub.s32 %v306, %v308
    %v310 = vrot.slane %v296, %v309
    %v311 = vcombine.low %v287, %v303
    %v312 = vcombine.high %v287, %v303
    %v314 = vunpack.c.l.s4 1934713408
    %v315 = vunpack.c.0.s8 %v314
    %v316 = vlaneseq
    %v317 = vshrl.u32 %v316, 7
    %v318 = vsub.s32 %v315, %v317
    %v319 = vrot.slane %v311, %v318
    %v321 = vunpack.c.l.s4 1934713408
    %v322 = vunpack.c.0.s8 %v321
    %v323 = vlaneseq
    %v324 = vshrl.u32 %v323, 7
    %v325 = vsub.s32 %v322, %v324
    %v326 = vrot.slane %v312, %v325
    %v327 = vcombine.low %v294, %v310
    %v328 = vcombine.high %v294, %v310
    %v330 = vunpack.c.l.s4 1934713408
    %v331 = vunpack.c.0.s8 %v330
    %v332 = vlaneseq
    %v333 = vshrl.u32 %v332, 7
    %v334 = vsub.s32 %v331, %v333
    %v335 = vrot.slane %v327, %v334
    %v337 = vunpack.c.l.s4 1934713408
    %v338 = vunpack.c.0.s8 %v337
    %v339 = vlaneseq
    %v340 = vshrl.u32 %v339, 7
    %v341 = vsub.s32 %v338, %v340
    %v342 = vrot.slane %v328, %v341
    %v343 = vcombine.high %v319, 0.0
    %v344 = vcombine.high %v326, 0.0
    %v345 = vcombine.high %v335, 0.0
    %v346 = vcombine.high %v342, 0.0
    %v347 = vcombine.low %v319, %v326
    %v349 = vunpack.c.l.s4 1983009808
    %v350 = vunpack.c.0.s8 %v349
    %v351 = vlaneseq
    %v352 = vshrl.u32 %v351, 7
    %v353 = vsub.s32 %v350, %v352
    %v354 = vrot.slane %v347, %v353
    %v355 = vcombine.low %v343, %v344
    %v357 = vunpack.c.l.s4 1983009808
    %v358 = vunpack.c.0.s8 %v357
    %v359 = vlaneseq
    %v360 = vshrl.u32 %v359, 7
    %v361 = vsub.s32 %v358, %v360
    %v362 = vrot.slane %v355, %v361
    %v363 = vcombine.low %v335, %v342
    %v365 = vunpack.c.l.s4 1983009808
    %v366 = vunpack.c.0.s8 %v365
    %v367 = vlaneseq
    %v368 = vshrl.u32 %v367, 7
    %v369 = vsub.s32 %v366, %v368
    %v370 = vrot.slane %v363, %v369
    %v371 = vcombine.low %v345, %v346
    %v373 = vunpack.c.l.s4 1983009808
    %v374 = vunpack.c.0.s8 %v373
    %v375 = vlaneseq
    %v376 = vshrl.u32 %v375, 7
    %v377 = vsub.s32 %v374, %v376
    %v378 = vrot.slane %v371, %v377
    %v379 = vcombine.low %v354, %v362
    %v380 = vcombine.high %v354, %v362
    %v382 = vunpack.c.l.s4 1934713408
    %v383 = vunpack.c.0.s8 %v382
    %v384 = vlaneseq
    %v385 = vshrl.u32 %v384, 7
    %v386 = vsub.s32 %v383, %v385
    %v387 = vrot.slane %v379, %v386
    %v389 = vunpack.c.l.s4 1934713408
    %v390 = vunpack.c.0.s8 %v389
    %v391 = vlaneseq
    %v392 = vshrl.u32 %v391, 7
    %v393 = vsub.s32 %v390, %v392
    %v394 = vrot.slane %v380, %v393
    %v395 = vcombine.low %v370, %v378
    %v396 = vcombine.high %v370, %v378
    %v398 = vunpack.c.l.s4 1934713408
    %v399 = vunpack.c.0.s8 %v398
    %v400 = vlaneseq
    %v401 = vshrl.u32 %v400, 7
    %v402 = vsub.s32 %v399, %v401
    %v403 = vrot.slane %v395, %v402
    %v405 = vunpack.c.l.s4 1934713408
    %v406 = vunpack.c.0.s8 %v405
    %v407 = vlaneseq
    %v408 = vshrl.u32 %v407, 7
    %v409 = vsub.s32 %v406, %v408
    %v410 = vrot.slane %v396, %v409
    %v411 = vcombine.low %v387, %v403
    %v412 = vcombine.high %v387, %v403
    %v413 = vcombine.low %v394, %v410
    %v414 = vcombine.high %v394, %v410
    %416 = vrot.lane.b32.xlu0 %v122, 112
    %v417 = vpop.permute.xlu0 %416
    %419 = vrot.lane.b32.xlu0 %v122, 96
    %v420 = vpop.permute.xlu0 %419
    %422 = vrot.lane.b32.xlu0 %v122, 80
    %v423 = vpop.permute.xlu0 %422
    %v425 = vcombine.low %v122, %v420
    %v426 = vcombine.high %v122, %v420
    %v428 = vunpack.c.l.s4 1983009808
    %v429 = vunpack.c.0.s8 %v428
    %v430 = vlaneseq
    %v431 = vshrl.u32 %v430, 7
    %v432 = vsub.s32 %v429, %v431
    %v433 = vrot.slane %v425, %v432
    %v435 = vunpack.c.l.s4 1983009808
    %v436 = vunpack.c.0.s8 %v435
    %v437 = vlaneseq
    %v438 = vshrl.u32 %v437, 7
    %v439 = vsub.s32 %v436, %v438
    %v440 = vrot.slane %v426, %v439
    %v441 = vcombine.low %v417, %v423
    %v442 = vcombine.high %v417, %v423
    %v444 = vunpack.c.l.s4 1983009808
    %v445 = vunpack.c.0.s8 %v444
    %v446 = vlaneseq
    %v447 = vshrl.u32 %v446, 7
    %v448 = vsub.s32 %v445, %v447
    %v449 = vrot.slane %v441, %v448
    %v451 = vunpack.c.l.s4 1983009808
    %v452 = vunpack.c.0.s8 %v451
    %v453 = vlaneseq
    %v454 = vshrl.u32 %v453, 7
    %v455 = vsub.s32 %v452, %v454
    %v456 = vrot.slane %v442, %v455
    %v457 = vcombine.low %v433, %v449
    %v458 = vcombine.high %v433, %v449
    %v460 = vunpack.c.l.s4 1934713408
    %v461 = vunpack.c.0.s8 %v460
    %v462 = vlaneseq
    %v463 = vshrl.u32 %v462, 7
    %v464 = vsub.s32 %v461, %v463
    %v465 = vrot.slane %v457, %v464
    %v467 = vunpack.c.l.s4 1934713408
    %v468 = vunpack.c.0.s8 %v467
    %v469 = vlaneseq
    %v470 = vshrl.u32 %v469, 7
    %v471 = vsub.s32 %v468, %v470
    %v472 = vrot.slane %v458, %v471
    %v473 = vcombine.low %v440, %v456
    %v474 = vcombine.high %v440, %v456
    %v476 = vunpack.c.l.s4 1934713408
    %v477 = vunpack.c.0.s8 %v476
    %v478 = vlaneseq
    %v479 = vshrl.u32 %v478, 7
    %v480 = vsub.s32 %v477, %v479
    %v481 = vrot.slane %v473, %v480
    %v483 = vunpack.c.l.s4 1934713408
    %v484 = vunpack.c.0.s8 %v483
    %v485 = vlaneseq
    %v486 = vshrl.u32 %v485, 7
    %v487 = vsub.s32 %v484, %v486
    %v488 = vrot.slane %v474, %v487
    %v489 = vcombine.high %v465, 0.0
    %v490 = vcombine.high %v472, 0.0
    %v491 = vcombine.high %v481, 0.0
    %v492 = vcombine.high %v488, 0.0
    %v493 = vcombine.low %v465, %v472
    %v495 = vunpack.c.l.s4 1983009808
    %v496 = vunpack.c.0.s8 %v495
    %v497 = vlaneseq
    %v498 = vshrl.u32 %v497, 7
    %v499 = vsub.s32 %v496, %v498
    %v500 = vrot.slane %v493, %v499
    %v501 = vcombine.low %v489, %v490
    %v503 = vunpack.c.l.s4 1983009808
    %v504 = vunpack.c.0.s8 %v503
    %v505 = vlaneseq
    %v506 = vshrl.u32 %v505, 7
    %v507 = vsub.s32 %v504, %v506
    %v508 = vrot.slane %v501, %v507
    %v509 = vcombine.low %v481, %v488
    %v511 = vunpack.c.l.s4 1983009808
    %v512 = vunpack.c.0.s8 %v511
    %v513 = vlaneseq
    %v514 = vshrl.u32 %v513, 7
    %v515 = vsub.s32 %v512, %v514
    %v516 = vrot.slane %v509, %v515
    %v517 = vcombine.low %v491, %v492
    %v519 = vunpack.c.l.s4 1983009808
    %v520 = vunpack.c.0.s8 %v519
    %v521 = vlaneseq
    %v522 = vshrl.u32 %v521, 7
    %v523 = vsub.s32 %v520, %v522
    %v524 = vrot.slane %v517, %v523
    %v525 = vcombine.low %v500, %v508
    %v526 = vcombine.high %v500, %v508
    %v528 = vunpack.c.l.s4 1934713408
    %v529 = vunpack.c.0.s8 %v528
    %v530 = vlaneseq
    %v531 = vshrl.u32 %v530, 7
    %v532 = vsub.s32 %v529, %v531
    %v533 = vrot.slane %v525, %v532
    %v535 = vunpack.c.l.s4 1934713408
    %v536 = vunpack.c.0.s8 %v535
    %v537 = vlaneseq
    %v538 = vshrl.u32 %v537, 7
    %v539 = vsub.s32 %v536, %v538
    %v540 = vrot.slane %v526, %v539
    %v541 = vcombine.low %v516, %v524
    %v542 = vcombine.high %v516, %v524
    %v544 = vunpack.c.l.s4 1934713408
    %v545 = vunpack.c.0.s8 %v544
    %v546 = vlaneseq
    %v547 = vshrl.u32 %v546, 7
    %v548 = vsub.s32 %v545, %v547
    %v549 = vrot.slane %v541, %v548
    %v551 = vunpack.c.l.s4 1934713408
    %v552 = vunpack.c.0.s8 %v551
    %v553 = vlaneseq
    %v554 = vshrl.u32 %v553, 7
    %v555 = vsub.s32 %v552, %v554
    %v556 = vrot.slane %v542, %v555
    %v557 = vcombine.low %v533, %v549
    %v558 = vcombine.high %v533, %v549
    %v559 = vcombine.low %v540, %v556
    %v560 = vcombine.high %v540, %v556
    %vm561 = vcmask 130048
    %v563 = vsel %vm561, %v265, 0
    %v566 = vsel %vm561, %v411, 0
    %568 = vmatprep.subr.mxu0 0.0
    %569 = vmatpush1.xpose.msra.mxu0 0.0
    %570 = vmatprep.subr.mxu0 0.0
    %571 = vmatpush1.xpose.msra.mxu0 0.0
    %572 = vmatprep.subr.mxu0 0.0
    %573 = vmatpush1.xpose.msra.mxu0 0.0
    %574 = vmatprep.subr.mxu0 0.0
    %575 = vmatpush1.xpose.msra.mxu0 0.0
    %576 = vmatprep.subr.mxu0 0.0
    %577 = vmatpush1.xpose.msra.mxu0 0.0
    %578 = vmatprep.subr.mxu0 0.0
    %579 = vmatpush1.xpose.msra.mxu0 0.0
    %580 = vmatprep.subr.mxu0 0.0
    %581 = vmatpush1.xpose.msra.mxu0 0.0
    %582 = vmatprep.subr.mxu0 0.0
    %583 = vmatpush1.xpose.msra.mxu0 0.0
    %584 = vmatprep.subr.mxu0 0.0
    %585 = vmatpush1.xpose.msra.mxu0 0.0
    %586 = vmatprep.subr.mxu0 0.0
    %587 = vmatpush1.xpose.msra.mxu0 0.0
    %588 = vmatprep.subr.mxu0 0.0
    %589 = vmatpush1.xpose.msra.mxu0 0.0
    %590 = vmatprep.subr.mxu0 0.0
    %591 = vmatpush1.xpose.msra.mxu0 0.0
    %592 = vmatprep.subr.mxu0 0.0
    %593 = vmatpush1.xpose.msra.mxu0 0.0
    %594 = vmatprep.subr.mxu0 0.0
    %595 = vmatpush1.xpose.msra.mxu0 0.0
    %596 = vmatprep.subr.mxu0 0.0
    %597 = vmatpush1.xpose.msra.mxu0 0.0
    %598 = vmatprep.subr.mxu0 0.0
    %599 = vmatpush1.xpose.msra.mxu0 %v566
    %600 = vmatprep.subr.mxu0 0.0
    %601 = vmatpush2.xpose.msra.mxu0 0.0
    %602 = vmatprep.subr.mxu0 0.0
    %603 = vmatpush2.xpose.msra.mxu0 0.0
    %604 = vmatprep.subr.mxu0 0.0
    %605 = vmatpush2.xpose.msra.mxu0 0.0
    %606 = vmatprep.subr.mxu0 0.0
    %607 = vmatpush2.xpose.msra.mxu0 0.0
    %608 = vmatprep.subr.mxu0 0.0
    %609 = vmatpush2.xpose.msra.mxu0 0.0
    %610 = vmatprep.subr.mxu0 0.0
    %611 = vmatpush2.xpose.msra.mxu0 0.0
    %612 = vmatprep.subr.mxu0 0.0
    %613 = vmatpush2.xpose.msra.mxu0 0.0
    %614 = vmatprep.subr.mxu0 0.0
    %615 = vmatpush2.xpose.msra.mxu0 0.0
    %616 = vmatprep.subr.mxu0 0.0
    %617 = vmatpush2.xpose.msra.mxu0 0.0
    %618 = vmatprep.subr.mxu0 0.0
    %619 = vmatpush2.xpose.msra.mxu0 0.0
    %620 = vmatprep.subr.mxu0 0.0
    %621 = vmatpush2.xpose.msra.mxu0 0.0
    %622 = vmatprep.subr.mxu0 0.0
    %623 = vmatpush2.xpose.msra.mxu0 0.0
    %624 = vmatprep.subr.mxu0 0.0
    %625 = vmatpush2.xpose.msra.mxu0 0.0
    %626 = vmatprep.subr.mxu0 0.0
    %627 = vmatpush2.xpose.msra.mxu0 0.0
    %628 = vmatprep.subr.mxu0 0.0
    %629 = vmatpush2.xpose.msra.mxu0 0.0
    %630 = vmatprep.subr.mxu0 0.0
    %631 = vmatpush2.xpose.msra.mxu0 0.0
    %632 = vmatprep.mubr.f32.mxu0 0.0
    %633 = vmatmul.mubr.f32.gmra.mxu0 %v563
    %v634 = vpop.f32.mrf.mxu0
    %v635 = vadd.f32 0.0, %v634
    %v636 = vpop.f32.mrf.mxu0
    %637 = vdwg.mxu0
    %v639 = vsel %vm561, %v266, 0
    %v642 = vsel %vm561, %v412, 0
    %644 = vmatprep.subr.mxu0 0.0
    %645 = vmatpush1.xpose.msra.mxu0 0.0
    %646 = vmatprep.subr.mxu0 0.0
    %647 = vmatpush1.xpose.msra.mxu0 0.0
    %648 = vmatprep.subr.mxu0 0.0
    %649 = vmatpush1.xpose.msra.mxu0 0.0
    %650 = vmatprep.subr.mxu0 0.0
    %651 = vmatpush1.xpose.msra.mxu0 0.0
    %652 = vmatprep.subr.mxu0 0.0
    %653 = vmatpush1.xpose.msra.mxu0 0.0
    %654 = vmatprep.subr.mxu0 0.0
    %655 = vmatpush1.xpose.msra.mxu0 0.0
    %656 = vmatprep.subr.mxu0 0.0
    %657 = vmatpush1.xpose.msra.mxu0 0.0
    %658 = vmatprep.subr.mxu0 0.0
    %659 = vmatpush1.xpose.msra.mxu0 0.0
    %660 = vmatprep.subr.mxu0 0.0
    %661 = vmatpush1.xpose.msra.mxu0 0.0
    %662 = vmatprep.subr.mxu0 0.0
    %663 = vmatpush1.xpose.msra.mxu0 0.0
    %664 = vmatprep.subr.mxu0 0.0
    %665 = vmatpush1.xpose.msra.mxu0 0.0
    %666 = vmatprep.subr.mxu0 0.0
    %667 = vmatpush1.xpose.msra.mxu0 0.0
    %668 = vmatprep.subr.mxu0 0.0
    %669 = vmatpush1.xpose.msra.mxu0 0.0
    %670 = vmatprep.subr.mxu0 0.0
    %671 = vmatpush1.xpose.msra.mxu0 0.0
    %672 = vmatprep.subr.mxu0 0.0
    %673 = vmatpush1.xpose.msra.mxu0 0.0
    %674 = vmatprep.subr.mxu0 0.0
    %675 = vmatpush1.xpose.msra.mxu0 %v642
    %676 = vmatprep.subr.mxu0 0.0
    %677 = vmatpush2.xpose.msra.mxu0 0.0
    %678 = vmatprep.subr.mxu0 0.0
    %679 = vmatpush2.xpose.msra.mxu0 0.0
    %680 = vmatprep.subr.mxu0 0.0
    %681 = vmatpush2.xpose.msra.mxu0 0.0
    %682 = vmatprep.subr.mxu0 0.0
    %683 = vmatpush2.xpose.msra.mxu0 0.0
    %684 = vmatprep.subr.mxu0 0.0
    %685 = vmatpush2.xpose.msra.mxu0 0.0
    %686 = vmatprep.subr.mxu0 0.0
    %687 = vmatpush2.xpose.msra.mxu0 0.0
    %688 = vmatprep.subr.mxu0 0.0
    %689 = vmatpush2.xpose.msra.mxu0 0.0
    %690 = vmatprep.subr.mxu0 0.0
    %691 = vmatpush2.xpose.msra.mxu0 0.0
    %692 = vmatprep.subr.mxu0 0.0
    %693 = vmatpush2.xpose.msra.mxu0 0.0
    %694 = vmatprep.subr.mxu0 0.0
    %695 = vmatpush2.xpose.msra.mxu0 0.0
    %696 = vmatprep.subr.mxu0 0.0
    %697 = vmatpush2.xpose.msra.mxu0 0.0
    %698 = vmatprep.subr.mxu0 0.0
    %699 = vmatpush2.xpose.msra.mxu0 0.0
    %700 = vmatprep.subr.mxu0 0.0
    %701 = vmatpush2.xpose.msra.mxu0 0.0
    %702 = vmatprep.subr.mxu0 0.0
    %703 = vmatpush2.xpose.msra.mxu0 0.0
    %704 = vmatprep.subr.mxu0 0.0
    %705 = vmatpush2.xpose.msra.mxu0 0.0
    %706 = vmatprep.subr.mxu0 0.0
    %707 = vmatpush2.xpose.msra.mxu0 0.0
    %708 = vmatprep.mubr.f32.mxu0 0.0
    %709 = vmatmul.mubr.f32.gmra.mxu0 %v639
    %v710 = vpop.f32.mrf.mxu0
    %v711 = vadd.f32 0.0, %v710
    %v712 = vpop.f32.mrf.mxu0
    %713 = vdwg.mxu0
    %v715 = vsel %vm561, %v267, 0
    %v718 = vsel %vm561, %v413, 0
    %720 = vmatprep.subr.mxu0 0.0
    %721 = vmatpush1.xpose.msra.mxu0 0.0
    %722 = vmatprep.subr.mxu0 0.0
    %723 = vmatpush1.xpose.msra.mxu0 0.0
    %724 = vmatprep.subr.mxu0 0.0
    %725 = vmatpush1.xpose.msra.mxu0 0.0
    %726 = vmatprep.subr.mxu0 0.0
    %727 = vmatpush1.xpose.msra.mxu0 0.0
    %728 = vmatprep.subr.mxu0 0.0
    %729 = vmatpush1.xpose.msra.mxu0 0.0
    %730 = vmatprep.subr.mxu0 0.0
    %731 = vmatpush1.xpose.msra.mxu0 0.0
    %732 = vmatprep.subr.mxu0 0.0
    %733 = vmatpush1.xpose.msra.mxu0 0.0
    %734 = vmatprep.subr.mxu0 0.0
    %735 = vmatpush1.xpose.msra.mxu0 0.0
    %736 = vmatprep.subr.mxu0 0.0
    %737 = vmatpush1.xpose.msra.mxu0 0.0
    %738 = vmatprep.subr.mxu0 0.0
    %739 = vmatpush1.xpose.msra.mxu0 0.0
    %740 = vmatprep.subr.mxu0 0.0
    %741 = vmatpush1.xpose.msra.mxu0 0.0
    %742 = vmatprep.subr.mxu0 0.0
    %743 = vmatpush1.xpose.msra.mxu0 0.0
    %744 = vmatprep.subr.mxu0 0.0
    %745 = vmatpush1.xpose.msra.mxu0 0.0
    %746 = vmatprep.subr.mxu0 0.0
    %747 = vmatpush1.xpose.msra.mxu0 0.0
    %748 = vmatprep.subr.mxu0 0.0
    %749 = vmatpush1.xpose.msra.mxu0 0.0
    %750 = vmatprep.subr.mxu0 0.0
    %751 = vmatpush1.xpose.msra.mxu0 %v718
    %752 = vmatprep.subr.mxu0 0.0
    %753 = vmatpush2.xpose.msra.mxu0 0.0
    %754 = vmatprep.subr.mxu0 0.0
    %755 = vmatpush2.xpose.msra.mxu0 0.0
    %756 = vmatprep.subr.mxu0 0.0
    %757 = vmatpush2.xpose.msra.mxu0 0.0
    %758 = vmatprep.subr.mxu0 0.0
    %759 = vmatpush2.xpose.msra.mxu0 0.0
    %760 = vmatprep.subr.mxu0 0.0
    %761 = vmatpush2.xpose.msra.mxu0 0.0
    %762 = vmatprep.subr.mxu0 0.0
    %763 = vmatpush2.xpose.msra.mxu0 0.0
    %764 = vmatprep.subr.mxu0 0.0
    %765 = vmatpush2.xpose.msra.mxu0 0.0
    %766 = vmatprep.subr.mxu0 0.0
    %767 = vmatpush2.xpose.msra.mxu0 0.0
    %768 = vmatprep.subr.mxu0 0.0
    %769 = vmatpush2.xpose.msra.mxu0 0.0
    %770 = vmatprep.subr.mxu0 0.0
    %771 = vmatpush2.xpose.msra.mxu0 0.0
    %772 = vmatprep.subr.mxu0 0.0
    %773 = vmatpush2.xpose.msra.mxu0 0.0
    %774 = vmatprep.subr.mxu0 0.0
    %775 = vmatpush2.xpose.msra.mxu0 0.0
    %776 = vmatprep.subr.mxu0 0.0
    %777 = vmatpush2.xpose.msra.mxu0 0.0
    %778 = vmatprep.subr.mxu0 0.0
    %779 = vmatpush2.xpose.msra.mxu0 0.0
    %780 = vmatprep.subr.mxu0 0.0
    %781 = vmatpush2.xpose.msra.mxu0 0.0
    %782 = vmatprep.subr.mxu0 0.0
    %783 = vmatpush2.xpose.msra.mxu0 0.0
    %784 = vmatprep.mubr.f32.mxu0 0.0
    %785 = vmatmul.mubr.f32.gmra.mxu0 %v715
    %v786 = vpop.f32.mrf.mxu0
    %v787 = vadd.f32 0.0, %v786
    %v788 = vpop.f32.mrf.mxu0
    %789 = vdwg.mxu0
    %v791 = vsel %vm561, %v268, 0
    %v794 = vsel %vm561, %v414, 0
    %796 = vmatprep.subr.mxu0 0.0
    %797 = vmatpush1.xpose.msra.mxu0 0.0
    %798 = vmatprep.subr.mxu0 0.0
    %799 = vmatpush1.xpose.msra.mxu0 0.0
    %800 = vmatprep.subr.mxu0 0.0
    %801 = vmatpush1.xpose.msra.mxu0 0.0
    %802 = vmatprep.subr.mxu0 0.0
    %803 = vmatpush1.xpose.msra.mxu0 0.0
    %804 = vmatprep.subr.mxu0 0.0
    %805 = vmatpush1.xpose.msra.mxu0 0.0
    %806 = vmatprep.subr.mxu0 0.0
    %807 = vmatpush1.xpose.msra.mxu0 0.0
    %808 = vmatprep.subr.mxu0 0.0
    %809 = vmatpush1.xpose.msra.mxu0 0.0
    %810 = vmatprep.subr.mxu0 0.0
    %811 = vmatpush1.xpose.msra.mxu0 0.0
    %812 = vmatprep.subr.mxu0 0.0
    %813 = vmatpush1.xpose.msra.mxu0 0.0
    %814 = vmatprep.subr.mxu0 0.0
    %815 = vmatpush1.xpose.msra.mxu0 0.0
    %816 = vmatprep.subr.mxu0 0.0
    %817 = vmatpush1.xpose.msra.mxu0 0.0
    %818 = vmatprep.subr.mxu0 0.0
    %819 = vmatpush1.xpose.msra.mxu0 0.0
    %820 = vmatprep.subr.mxu0 0.0
    %821 = vmatpush1.xpose.msra.mxu0 0.0
    %822 = vmatprep.subr.mxu0 0.0
    %823 = vmatpush1.xpose.msra.mxu0 0.0
    %824 = vmatprep.subr.mxu0 0.0
    %825 = vmatpush1.xpose.msra.mxu0 0.0
    %826 = vmatprep.subr.mxu0 0.0
    %827 = vmatpush1.xpose.msra.mxu0 %v794
    %828 = vmatprep.subr.mxu0 0.0
    %829 = vmatpush2.xpose.msra.mxu0 0.0
    %830 = vmatprep.subr.mxu0 0.0
    %831 = vmatpush2.xpose.msra.mxu0 0.0
    %832 = vmatprep.subr.mxu0 0.0
    %833 = vmatpush2.xpose.msra.mxu0 0.0
    %834 = vmatprep.subr.mxu0 0.0
    %835 = vmatpush2.xpose.msra.mxu0 0.0
    %836 = vmatprep.subr.mxu0 0.0
    %837 = vmatpush2.xpose.msra.mxu0 0.0
    %838 = vmatprep.subr.mxu0 0.0
    %839 = vmatpush2.xpose.msra.mxu0 0.0
    %840 = vmatprep.subr.mxu0 0.0
    %841 = vmatpush2.xpose.msra.mxu0 0.0
    %842 = vmatprep.subr.mxu0 0.0
    %843 = vmatpush2.xpose.msra.mxu0 0.0
    %844 = vmatprep.subr.mxu0 0.0
    %845 = vmatpush2.xpose.msra.mxu0 0.0
    %846 = vmatprep.subr.mxu0 0.0
    %847 = vmatpush2.xpose.msra.mxu0 0.0
    %848 = vmatprep.subr.mxu0 0.0
    %849 = vmatpush2.xpose.msra.mxu0 0.0
    %850 = vmatprep.subr.mxu0 0.0
    %851 = vmatpush2.xpose.msra.mxu0 0.0
    %852 = vmatprep.subr.mxu0 0.0
    %853 = vmatpush2.xpose.msra.mxu0 0.0
    %854 = vmatprep.subr.mxu0 0.0
    %855 = vmatpush2.xpose.msra.mxu0 0.0
    %856 = vmatprep.subr.mxu0 0.0
    %857 = vmatpush2.xpose.msra.mxu0 0.0
    %858 = vmatprep.subr.mxu0 0.0
    %859 = vmatpush2.xpose.msra.mxu0 0.0
    %860 = vmatprep.mubr.f32.mxu0 0.0
    %861 = vmatmul.mubr.f32.gmra.mxu0 %v791
    %v862 = vpop.f32.mrf.mxu0
    %v863 = vadd.f32 0.0, %v862
    %v864 = vpop.f32.mrf.mxu0
    %865 = vdwg.mxu0
    %vm866 = vcmask 64512
    %v867 = vsel %vm866, %v635, -inf
    %868 = vmax.xlane.f32.xlu0 %v867
    %v869 = vpop.xlane.xlu0 %868
    %v870 = vsel %vm866, %v711, -inf
    %871 = vmax.xlane.f32.xlu0 %v870
    %v872 = vpop.xlane.xlu0 %871
    %v873 = vsel %vm866, %v787, -inf
    %874 = vmax.xlane.f32.xlu0 %v873
    %v875 = vpop.xlane.xlu0 %874
    %v876 = vsel %vm866, %v863, -inf
    %877 = vmax.xlane.f32.xlu0 %v876
    %v878 = vpop.xlane.xlu0 %877
    %v879 = vsub.f32 %v635, %v869
    %v880 = vsub.f32 %v711, %v872
    %v881 = vsub.f32 %v787, %v875
    %v882 = vsub.f32 %v863, %v878
    %v883 = vmul.f32 %v879, 1.442695
    %v884 = vpow.pop %v883
    %v885 = vmul.f32 %v880, 1.442695
    %v886 = vpow.pop %v885
    %v887 = vmul.f32 %v881, 1.442695
    %v888 = vpow.pop %v887
    %v889 = vmul.f32 %v882, 1.442695
    %v890 = vpow.pop %v889
    %v891 = vsel %vm866, %v884, 0.0
    %892 = vadd.xlane.f32.xlu0 %v891
    %v893 = vpop.xlane.xlu0 %892
    %v894 = vsel %vm866, %v886, 0.0
    %895 = vadd.xlane.f32.xlu0 %v894
    %v896 = vpop.xlane.xlu0 %895
    %v897 = vsel %vm866, %v888, 0.0
    %898 = vadd.xlane.f32.xlu0 %v897
    %v899 = vpop.xlane.xlu0 %898
    %v900 = vsel %vm866, %v890, 0.0
    %901 = vadd.xlane.f32.xlu0 %v900
    %v902 = vpop.xlane.xlu0 %901
    %v904 = vsel %vm866, %v884, 0
    %906 = vmatprep.subr.mxu0 0.0
    %907 = vmatpush1.msra.mxu0 0.0
    %908 = vmatprep.subr.mxu0 0.0
    %909 = vmatpush1.msra.mxu0 0.0
    %910 = vmatprep.subr.mxu0 0.0
    %911 = vmatpush1.msra.mxu0 0.0
    %912 = vmatprep.subr.mxu0 0.0
    %913 = vmatpush1.msra.mxu0 0.0
    %914 = vmatprep.subr.mxu0 0.0
    %915 = vmatpush1.msra.mxu0 0.0
    %916 = vmatprep.subr.mxu0 0.0
    %917 = vmatpush1.msra.mxu0 0.0
    %918 = vmatprep.subr.mxu0 0.0
    %919 = vmatpush1.msra.mxu0 0.0
    %920 = vmatprep.subr.mxu0 0.0
    %921 = vmatpush1.msra.mxu0 0.0
    %922 = vmatprep.subr.mxu0 0.0
    %923 = vmatpush1.msra.mxu0 0.0
    %924 = vmatprep.subr.mxu0 0.0
    %925 = vmatpush1.msra.mxu0 0.0
    %926 = vmatprep.subr.mxu0 0.0
    %927 = vmatpush1.msra.mxu0 0.0
    %928 = vmatprep.subr.mxu0 0.0
    %929 = vmatpush1.msra.mxu0 0.0
    %930 = vmatprep.subr.mxu0 0.0
    %931 = vmatpush1.msra.mxu0 0.0
    %932 = vmatprep.subr.mxu0 0.0
    %933 = vmatpush1.msra.mxu0 0.0
    %934 = vmatprep.subr.mxu0 0.0
    %935 = vmatpush1.msra.mxu0 0.0
    %936 = vmatprep.subr.mxu0 0.0
    %937 = vmatpush1.msra.mxu0 %v557
    %938 = vmatprep.subr.mxu0 0.0
    %939 = vmatpush2.msra.mxu0 0.0
    %940 = vmatprep.subr.mxu0 0.0
    %941 = vmatpush2.msra.mxu0 0.0
    %942 = vmatprep.subr.mxu0 0.0
    %943 = vmatpush2.msra.mxu0 0.0
    %944 = vmatprep.subr.mxu0 0.0
    %945 = vmatpush2.msra.mxu0 0.0
    %946 = vmatprep.subr.mxu0 0.0
    %947 = vmatpush2.msra.mxu0 0.0
    %948 = vmatprep.subr.mxu0 0.0
    %949 = vmatpush2.msra.mxu0 0.0
    %950 = vmatprep.subr.mxu0 0.0
    %951 = vmatpush2.msra.mxu0 0.0
    %952 = vmatprep.subr.mxu0 0.0
    %953 = vmatpush2.msra.mxu0 0.0
    %954 = vmatprep.subr.mxu0 0.0
    %955 = vmatpush2.msra.mxu0 0.0
    %956 = vmatprep.subr.mxu0 0.0
    %957 = vmatpush2.msra.mxu0 0.0
    %958 = vmatprep.subr.mxu0 0.0
    %959 = vmatpush2.msra.mxu0 0.0
    %960 = vmatprep.subr.mxu0 0.0
    %961 = vmatpush2.msra.mxu0 0.0
    %962 = vmatprep.subr.mxu0 0.0
    %963 = vmatpush2.msra.mxu0 0.0
    %964 = vmatprep.subr.mxu0 0.0
    %965 = vmatpush2.msra.mxu0 0.0
    %966 = vmatprep.subr.mxu0 0.0
    %967 = vmatpush2.msra.mxu0 0.0
    %968 = vmatprep.subr.mxu0 0.0
    %969 = vmatpush2.msra.mxu0 0.0
    %970 = vmatprep.mubr.f32.mxu0 0.0
    %971 = vmatmul.mubr.f32.gmra.mxu0 %v904
    %v972 = vpop.f32.mrf.mxu0
    %v973 = vadd.f32 0.0, %v972
    %v974 = vpop.f32.mrf.mxu0
    %975 = vdwg.mxu0
    %v977 = vsel %vm866, %v886, 0
    %979 = vmatprep.subr.mxu0 0.0
    %980 = vmatpush1.msra.mxu0 0.0
    %981 = vmatprep.subr.mxu0 0.0
    %982 = vmatpush1.msra.mxu0 0.0
    %983 = vmatprep.subr.mxu0 0.0
    %984 = vmatpush1.msra.mxu0 0.0
    %985 = vmatprep.subr.mxu0 0.0
    %986 = vmatpush1.msra.mxu0 0.0
    %987 = vmatprep.subr.mxu0 0.0
    %988 = vmatpush1.msra.mxu0 0.0
    %989 = vmatprep.subr.mxu0 0.0
    %990 = vmatpush1.msra.mxu0 0.0
    %991 = vmatprep.subr.mxu0 0.0
    %992 = vmatpush1.msra.mxu0 0.0
    %993 = vmatprep.subr.mxu0 0.0
    %994 = vmatpush1.msra.mxu0 0.0
    %995 = vmatprep.subr.mxu0 0.0
    %996 = vmatpush1.msra.mxu0 0.0
    %997 = vmatprep.subr.mxu0 0.0
    %998 = vmatpush1.msra.mxu0 0.0
    %999 = vmatprep.subr.mxu0 0.0
    %1000 = vmatpush1.msra.mxu0 0.0
    %1001 = vmatprep.subr.mxu0 0.0
    %1002 = vmatpush1.msra.mxu0 0.0
    %1003 = vmatprep.subr.mxu0 0.0
    %1004 = vmatpush1.msra.mxu0 0.0
    %1005 = vmatprep.subr.mxu0 0.0
    %1006 = vmatpush1.msra.mxu0 0.0
    %1007 = vmatprep.subr.mxu0 0.0
    %1008 = vmatpush1.msra.mxu0 0.0
    %1009 = vmatprep.subr.mxu0 0.0
    %1010 = vmatpush1.msra.mxu0 %v558
    %1011 = vmatprep.subr.mxu0 0.0
    %1012 = vmatpush2.msra.mxu0 0.0
    %1013 = vmatprep.subr.mxu0 0.0
    %1014 = vmatpush2.msra.mxu0 0.0
    %1015 = vmatprep.subr.mxu0 0.0
    %1016 = vmatpush2.msra.mxu0 0.0
    %1017 = vmatprep.subr.mxu0 0.0
    %1018 = vmatpush2.msra.mxu0 0.0
    %1019 = vmatprep.subr.mxu0 0.0
    %1020 = vmatpush2.msra.mxu0 0.0
    %1021 = vmatprep.subr.mxu0 0.0
    %1022 = vmatpush2.msra.mxu0 0.0
    %1023 = vmatprep.subr.mxu0 0.0
    %1024 = vmatpush2.msra.mxu0 0.0
    %1025 = vmatprep.subr.mxu0 0.0
    %1026 = vmatpush2.msra.mxu0 0.0
    %1027 = vmatprep.subr.mxu0 0.0
    %1028 = vmatpush2.msra.mxu0 0.0
    %1029 = vmatprep.subr.mxu0 0.0
    %1030 = vmatpush2.msra.mxu0 0.0
    %1031 = vmatprep.subr.mxu0 0.0
    %1032 = vmatpush2.msra.mxu0 0.0
    %1033 = vmatprep.subr.mxu0 0.0
    %1034 = vmatpush2.msra.mxu0 0.0
    %1035 = vmatprep.subr.mxu0 0.0
    %1036 = vmatpush2.msra.mxu0 0.0
    %1037 = vmatprep.subr.mxu0 0.0
    %1038 = vmatpush2.msra.mxu0 0.0
    %1039 = vmatprep.subr.mxu0 0.0
    %1040 = vmatpush2.msra.mxu0 0.0
    %1041 = vmatprep.subr.mxu0 0.0
    %1042 = vmatpush2.msra.mxu0 0.0
    %1043 = vmatprep.mubr.f32.mxu0 0.0
    %1044 = vmatmul.mubr.f32.gmra.mxu0 %v977
    %v1045 = vpop.f32.mrf.mxu0
    %v1046 = vadd.f32 0.0, %v1045
    %v1047 = vpop.f32.mrf.mxu0
    %1048 = vdwg.mxu0
    %v1050 = vsel %vm866, %v888, 0
    %1052 = vmatprep.subr.mxu0 0.0
    %1053 = vmatpush1.msra.mxu0 0.0
    %1054 = vmatprep.subr.mxu0 0.0
    %1055 = vmatpush1.msra.mxu0 0.0
    %1056 = vmatprep.subr.mxu0 0.0
    %1057 = vmatpush1.msra.mxu0 0.0
    %1058 = vmatprep.subr.mxu0 0.0
    %1059 = vmatpush1.msra.mxu0 0.0
    %1060 = vmatprep.subr.mxu0 0.0
    %1061 = vmatpush1.msra.mxu0 0.0
    %1062 = vmatprep.subr.mxu0 0.0
    %1063 = vmatpush1.msra.mxu0 0.0
    %1064 = vmatprep.subr.mxu0 0.0
    %1065 = vmatpush1.msra.mxu0 0.0
    %1066 = vmatprep.subr.mxu0 0.0
    %1067 = vmatpush1.msra.mxu0 0.0
    %1068 = vmatprep.subr.mxu0 0.0
    %1069 = vmatpush1.msra.mxu0 0.0
    %1070 = vmatprep.subr.mxu0 0.0
    %1071 = vmatpush1.msra.mxu0 0.0
    %1072 = vmatprep.subr.mxu0 0.0
    %1073 = vmatpush1.msra.mxu0 0.0
    %1074 = vmatprep.subr.mxu0 0.0
    %1075 = vmatpush1.msra.mxu0 0.0
    %1076 = vmatprep.subr.mxu0 0.0
    %1077 = vmatpush1.msra.mxu0 0.0
    %1078 = vmatprep.subr.mxu0 0.0
    %1079 = vmatpush1.msra.mxu0 0.0
    %1080 = vmatprep.subr.mxu0 0.0
    %1081 = vmatpush1.msra.mxu0 0.0
    %1082 = vmatprep.subr.mxu0 0.0
    %1083 = vmatpush1.msra.mxu0 %v559
    %1084 = vmatprep.subr.mxu0 0.0
    %1085 = vmatpush2.msra.mxu0 0.0
    %1086 = vmatprep.subr.mxu0 0.0
    %1087 = vmatpush2.msra.mxu0 0.0
    %1088 = vmatprep.subr.mxu0 0.0
    %1089 = vmatpush2.msra.mxu0 0.0
    %1090 = vmatprep.subr.mxu0 0.0
    %1091 = vmatpush2.msra.mxu0 0.0
    %1092 = vmatprep.subr.mxu0 0.0
    %1093 = vmatpush2.msra.mxu0 0.0
    %1094 = vmatprep.subr.mxu0 0.0
    %1095 = vmatpush2.msra.mxu0 0.0
    %1096 = vmatprep.subr.mxu0 0.0
    %1097 = vmatpush2.msra.mxu0 0.0
    %1098 = vmatprep.subr.mxu0 0.0
    %1099 = vmatpush2.msra.mxu0 0.0
    %1100 = vmatprep.subr.mxu0 0.0
    %1101 = vmatpush2.msra.mxu0 0.0
    %1102 = vmatprep.subr.mxu0 0.0
    %1103 = vmatpush2.msra.mxu0 0.0
    %1104 = vmatprep.subr.mxu0 0.0
    %1105 = vmatpush2.msra.mxu0 0.0
    %1106 = vmatprep.subr.mxu0 0.0
    %1107 = vmatpush2.msra.mxu0 0.0
    %1108 = vmatprep.subr.mxu0 0.0
    %1109 = vmatpush2.msra.mxu0 0.0
    %1110 = vmatprep.subr.mxu0 0.0
    %1111 = vmatpush2.msra.mxu0 0.0
    %1112 = vmatprep.subr.mxu0 0.0
    %1113 = vmatpush2.msra.mxu0 0.0
    %1114 = vmatprep.subr.mxu0 0.0
    %1115 = vmatpush2.msra.mxu0 0.0
    %1116 = vmatprep.mubr.f32.mxu0 0.0
    %1117 = vmatmul.mubr.f32.gmra.mxu0 %v1050
    %v1118 = vpop.f32.mrf.mxu0
    %v1119 = vadd.f32 0.0, %v1118
    %v1120 = vpop.f32.mrf.mxu0
    %1121 = vdwg.mxu0
    %v1123 = vsel %vm866, %v890, 0
    %1125 = vmatprep.subr.mxu0 0.0
    %1126 = vmatpush1.msra.mxu0 0.0
    %1127 = vmatprep.subr.mxu0 0.0
    %1128 = vmatpush1.msra.mxu0 0.0
    %1129 = vmatprep.subr.mxu0 0.0
    %1130 = vmatpush1.msra.mxu0 0.0
    %1131 = vmatprep.subr.mxu0 0.0
    %1132 = vmatpush1.msra.mxu0 0.0
    %1133 = vmatprep.subr.mxu0 0.0
    %1134 = vmatpush1.msra.mxu0 0.0
    %1135 = vmatprep.subr.mxu0 0.0
    %1136 = vmatpush1.msra.mxu0 0.0
    %1137 = vmatprep.subr.mxu0 0.0
    %1138 = vmatpush1.msra.mxu0 0.0
    %1139 = vmatprep.subr.mxu0 0.0
    %1140 = vmatpush1.msra.mxu0 0.0
    %1141 = vmatprep.subr.mxu0 0.0
    %1142 = vmatpush1.msra.mxu0 0.0
    %1143 = vmatprep.subr.mxu0 0.0
    %1144 = vmatpush1.msra.mxu0 0.0
    %1145 = vmatprep.subr.mxu0 0.0
    %1146 = vmatpush1.msra.mxu0 0.0
    %1147 = vmatprep.subr.mxu0 0.0
    %1148 = vmatpush1.msra.mxu0 0.0
    %1149 = vmatprep.subr.mxu0 0.0
    %1150 = vmatpush1.msra.mxu0 0.0
    %1151 = vmatprep.subr.mxu0 0.0
    %1152 = vmatpush1.msra.mxu0 0.0
    %1153 = vmatprep.subr.mxu0 0.0
    %1154 = vmatpush1.msra.mxu0 0.0
    %1155 = vmatprep.subr.mxu0 0.0
    %1156 = vmatpush1.msra.mxu0 %v560
    %1157 = vmatprep.subr.mxu0 0.0
    %1158 = vmatpush2.msra.mxu0 0.0
    %1159 = vmatprep.subr.mxu0 0.0
    %1160 = vmatpush2.msra.mxu0 0.0
    %1161 = vmatprep.subr.mxu0 0.0
    %1162 = vmatpush2.msra.mxu0 0.0
    %1163 = vmatprep.subr.mxu0 0.0
    %1164 = vmatpush2.msra.mxu0 0.0
    %1165 = vmatprep.subr.mxu0 0.0
    %1166 = vmatpush2.msra.mxu0 0.0
    %1167 = vmatprep.subr.mxu0 0.0
    %1168 = vmatpush2.msra.mxu0 0.0
    %1169 = vmatprep.subr.mxu0 0.0
    %1170 = vmatpush2.msra.mxu0 0.0
    %1171 = vmatprep.subr.mxu0 0.0
    %1172 = vmatpush2.msra.mxu0 0.0
    %1173 = vmatprep.subr.mxu0 0.0
    %1174 = vmatpush2.msra.mxu0 0.0
    %1175 = vmatprep.subr.mxu0 0.0
    %1176 = vmatpush2.msra.mxu0 0.0
    %1177 = vmatprep.subr.mxu0 0.0
    %1178 = vmatpush2.msra.mxu0 0.0
    %1179 = vmatprep.subr.mxu0 0.0
    %1180 = vmatpush2.msra.mxu0 0.0
    %1181 = vmatprep.subr.mxu0 0.0
    %1182 = vmatpush2.msra.mxu0 0.0
    %1183 = vmatprep.subr.mxu0 0.0
    %1184 = vmatpush2.msra.mxu0 0.0
    %1185 = vmatprep.subr.mxu0 0.0
    %1186 = vmatpush2.msra.mxu0 0.0
    %1187 = vmatprep.subr.mxu0 0.0
    %1188 = vmatpush2.msra.mxu0 0.0
    %1189 = vmatprep.mubr.f32.mxu0 0.0
    %1190 = vmatmul.mubr.f32.gmra.mxu0 %v1123
    %v1191 = vpop.f32.mrf.mxu0
    %v1192 = vadd.f32 0.0, %v1191
    %v1193 = vpop.f32.mrf.mxu0
    %1194 = vdwg.mxu0
    %v1195 = vrcp.pop %v893
    %v1196 = vrcp.pop %v896
    %v1197 = vrcp.pop %v899
    %v1198 = vrcp.pop %v902
    %v1199 = vmul.f32 %v973, %v1195
    %v1200 = vmul.f32 %v1046, %v1196
    %v1201 = vmul.f32 %v1119, %v1197
    %v1202 = vmul.f32 %v1192, %v1198
    %v1203 = vcombine.low %v1199, %v1201
    %v1204 = vcombine.high %v1199, %v1201
    %v1206 = vunpack.c.l.s4 1983009808
    %v1207 = vunpack.c.0.s8 %v1206
    %v1208 = vlaneseq
    %v1209 = vshrl.u32 %v1208, 7
    %v1210 = vsub.s32 %v1207, %v1209
    %v1211 = vrot.slane %v1203, %v1210
    %v1213 = vunpack.c.l.s4 1983009808
    %v1214 = vunpack.c.0.s8 %v1213
    %v1215 = vlaneseq
    %v1216 = vshrl.u32 %v1215, 7
    %v1217 = vsub.s32 %v1214, %v1216
    %v1218 = vrot.slane %v1204, %v1217
    %v1219 = vcombine.low %v1200, %v1202
    %v1220 = vcombine.high %v1200, %v1202
    %v1222 = vunpack.c.l.s4 1983009808
    %v1223 = vunpack.c.0.s8 %v1222
    %v1224 = vlaneseq
    %v1225 = vshrl.u32 %v1224, 7
    %v1226 = vsub.s32 %v1223, %v1225
    %v1227 = vrot.slane %v1219, %v1226
    %v1229 = vunpack.c.l.s4 1983009808
    %v1230 = vunpack.c.0.s8 %v1229
    %v1231 = vlaneseq
    %v1232 = vshrl.u32 %v1231, 7
    %v1233 = vsub.s32 %v1230, %v1232
    %v1234 = vrot.slane %v1220, %v1233
    %v1235 = vcombine.low %v1211, %v1227
    %v1236 = vcombine.high %v1211, %v1227
    %v1238 = vunpack.c.l.s4 1934713408
    %v1239 = vunpack.c.0.s8 %v1238
    %v1240 = vlaneseq
    %v1241 = vshrl.u32 %v1240, 7
    %v1242 = vsub.s32 %v1239, %v1241
    %v1243 = vrot.slane %v1235, %v1242
    %v1245 = vunpack.c.l.s4 1934713408
    %v1246 = vunpack.c.0.s8 %v1245
    %v1247 = vlaneseq
    %v1248 = vshrl.u32 %v1247, 7
    %v1249 = vsub.s32 %v1246, %v1248
    %v1250 = vrot.slane %v1236, %v1249
    %v1251 = vcombine.low %v1218, %v1234
    %v1252 = vcombine.high %v1218, %v1234
    %v1254 = vunpack.c.l.s4 1934713408
    %v1255 = vunpack.c.0.s8 %v1254
    %v1256 = vlaneseq
    %v1257 = vshrl.u32 %v1256, 7
    %v1258 = vsub.s32 %v1255, %v1257
    %v1259 = vrot.slane %v1251, %v1258
    %v1261 = vunpack.c.l.s4 1934713408
    %v1262 = vunpack.c.0.s8 %v1261
    %v1263 = vlaneseq
    %v1264 = vshrl.u32 %v1263, 7
    %v1265 = vsub.s32 %v1262, %v1264
    %v1266 = vrot.slane %v1252, %v1265
    %v1267 = vcombine.high %v1243, 0.0
    %v1268 = vcombine.high %v1250, 0.0
    %v1269 = vcombine.high %v1259, 0.0
    %v1270 = vcombine.high %v1266, 0.0
    %v1271 = vcombine.low %v1243, %v1250
    %v1273 = vunpack.c.l.s4 1983009808
    %v1274 = vunpack.c.0.s8 %v1273
    %v1275 = vlaneseq
    %v1276 = vshrl.u32 %v1275, 7
    %v1277 = vsub.s32 %v1274, %v1276
    %v1278 = vrot.slane %v1271, %v1277
    %v1279 = vcombine.low %v1267, %v1268
    %v1281 = vunpack.c.l.s4 1983009808
    %v1282 = vunpack.c.0.s8 %v1281
    %v1283 = vlaneseq
    %v1284 = vshrl.u32 %v1283, 7
    %v1285 = vsub.s32 %v1282, %v1284
    %v1286 = vrot.slane %v1279, %v1285
    %v1287 = vcombine.low %v1259, %v1266
    %v1289 = vunpack.c.l.s4 1983009808
    %v1290 = vunpack.c.0.s8 %v1289
    %v1291 = vlaneseq
    %v1292 = vshrl.u32 %v1291, 7
    %v1293 = vsub.s32 %v1290, %v1292
    %v1294 = vrot.slane %v1287, %v1293
    %v1295 = vcombine.low %v1269, %v1270
    %v1297 = vunpack.c.l.s4 1983009808
    %v1298 = vunpack.c.0.s8 %v1297
    %v1299 = vlaneseq
    %v1300 = vshrl.u32 %v1299, 7
    %v1301 = vsub.s32 %v1298, %v1300
    %v1302 = vrot.slane %v1295, %v1301
    %v1303 = vcombine.low %v1278, %v1286
    %v1304 = vcombine.high %v1278, %v1286
    %v1306 = vunpack.c.l.s4 1934713408
    %v1307 = vunpack.c.0.s8 %v1306
    %v1308 = vlaneseq
    %v1309 = vshrl.u32 %v1308, 7
    %v1310 = vsub.s32 %v1307, %v1309
    %v1311 = vrot.slane %v1303, %v1310
    %v1313 = vunpack.c.l.s4 1934713408
    %v1314 = vunpack.c.0.s8 %v1313
    %v1315 = vlaneseq
    %v1316 = vshrl.u32 %v1315, 7
    %v1317 = vsub.s32 %v1314, %v1316
    %v1318 = vrot.slane %v1304, %v1317
    %v1319 = vcombine.low %v1294, %v1302
    %v1320 = vcombine.high %v1294, %v1302
    %v1322 = vunpack.c.l.s4 1934713408
    %v1323 = vunpack.c.0.s8 %v1322
    %v1324 = vlaneseq
    %v1325 = vshrl.u32 %v1324, 7
    %v1326 = vsub.s32 %v1323, %v1325
    %v1327 = vrot.slane %v1319, %v1326
    %v1329 = vunpack.c.l.s4 1934713408
    %v1330 = vunpack.c.0.s8 %v1329
    %v1331 = vlaneseq
    %v1332 = vshrl.u32 %v1331, 7
    %v1333 = vsub.s32 %v1330, %v1332
    %v1334 = vrot.slane %v1320, %v1333
    %v1335 = vcombine.low %v1311, %v1327
    %v1336 = vcombine.high %v1311, %v1327
    %v1337 = vcombine.low %v1318, %v1334
    %v1338 = vcombine.high %v1318, %v1334
    %1340 = vrot.lane.b32.xlu0 %v1336, 16
    %v1341 = vpop.permute.xlu0 %1340
    %1344 = vrot.lane.b32.xlu0 %v1337, 32
    %v1345 = vpop.permute.xlu0 %1344
    %1348 = vrot.lane.b32.xlu0 %v1338, 48
    %v1349 = vpop.permute.xlu0 %1348
    %v1351 = vsel %vm561, %v1335, %v1341
    %vm1352 = vcmask 261120
    %v1353 = vsel %vm1352, %v1351, %v1345
    %vm1354 = vcmask 392192
    %v1355 = vsel %vm1354, %v1353, %v1349
    %v1356 = vld [vmem:[%s2] sm:$0xff]
    %v1357 = vld [vmem:[%s2 + $0x8] sm:$0xff]
    %v1358 = vld [vmem:[%s2 + $0x10] sm:$0xff]
    %v1359 = vld [vmem:[%s2 + $0x18] sm:$0xff]
    %v1360 = vld [vmem:[%s2 + $0x20] sm:$0xff]
    %v1361 = vld [vmem:[%s2 + $0x28] sm:$0xff]
    %v1362 = vld [vmem:[%s2 + $0x30] sm:$0xff]
    %v1363 = vld [vmem:[%s2 + $0x38] sm:$0xff]
    %vm1364 = vcmask 523264
    %v1366 = vsel %vm1364, %v1355, 0
    %1368 = vmatprep.subr.mxu0 0.0
    %1369 = vmatpush1.msra.mxu0 0.0
    %1370 = vmatprep.subr.mxu0 0.0
    %1371 = vmatpush1.msra.mxu0 0.0
    %1372 = vmatprep.subr.mxu0 0.0
    %1373 = vmatpush1.msra.mxu0 0.0
    %1374 = vmatprep.subr.mxu0 0.0
    %1375 = vmatpush1.msra.mxu0 0.0
    %1376 = vmatprep.subr.mxu0 0.0
    %1377 = vmatpush1.msra.mxu0 0.0
    %1378 = vmatprep.subr.mxu0 0.0
    %1379 = vmatpush1.msra.mxu0 0.0
    %1380 = vmatprep.subr.mxu0 0.0
    %1381 = vmatpush1.msra.mxu0 0.0
    %1382 = vmatprep.subr.mxu0 0.0
    %1383 = vmatpush1.msra.mxu0 0.0
    %1384 = vmatprep.subr.mxu0 0.0
    %1385 = vmatpush1.msra.mxu0 %v1363
    %1386 = vmatprep.subr.mxu0 0.0
    %1387 = vmatpush1.msra.mxu0 %v1362
    %1388 = vmatprep.subr.mxu0 0.0
    %1389 = vmatpush1.msra.mxu0 %v1361
    %1390 = vmatprep.subr.mxu0 0.0
    %1391 = vmatpush1.msra.mxu0 %v1360
    %1392 = vmatprep.subr.mxu0 0.0
    %1393 = vmatpush1.msra.mxu0 %v1359
    %1394 = vmatprep.subr.mxu0 0.0
    %1395 = vmatpush1.msra.mxu0 %v1358
    %1396 = vmatprep.subr.mxu0 0.0
    %1397 = vmatpush1.msra.mxu0 %v1357
    %1398 = vmatprep.subr.mxu0 0.0
    %1399 = vmatpush1.msra.mxu0 %v1356
    %1400 = vmatprep.subr.mxu0 0.0
    %1401 = vmatpush2.msra.mxu0 0.0
    %1402 = vmatprep.subr.mxu0 0.0
    %1403 = vmatpush2.msra.mxu0 0.0
    %1404 = vmatprep.subr.mxu0 0.0
    %1405 = vmatpush2.msra.mxu0 0.0
    %1406 = vmatprep.subr.mxu0 0.0
    %1407 = vmatpush2.msra.mxu0 0.0
    %1408 = vmatprep.subr.mxu0 0.0
    %1409 = vmatpush2.msra.mxu0 0.0
    %1410 = vmatprep.subr.mxu0 0.0
    %1411 = vmatpush2.msra.mxu0 0.0
    %1412 = vmatprep.subr.mxu0 0.0
    %1413 = vmatpush2.msra.mxu0 0.0
    %1414 = vmatprep.subr.mxu0 0.0
    %1415 = vmatpush2.msra.mxu0 0.0
    %1416 = vmatprep.subr.mxu0 0.0
    %1417 = vmatpush2.msra.mxu0 0.0
    %1418 = vmatprep.subr.mxu0 0.0
    %1419 = vmatpush2.msra.mxu0 0.0
    %1420 = vmatprep.subr.mxu0 0.0
    %1421 = vmatpush2.msra.mxu0 0.0
    %1422 = vmatprep.subr.mxu0 0.0
    %1423 = vmatpush2.msra.mxu0 0.0
    %1424 = vmatprep.subr.mxu0 0.0
    %1425 = vmatpush2.msra.mxu0 0.0
    %1426 = vmatprep.subr.mxu0 0.0
    %1427 = vmatpush2.msra.mxu0 0.0
    %1428 = vmatprep.subr.mxu0 0.0
    %1429 = vmatpush2.msra.mxu0 0.0
    %1430 = vmatprep.subr.mxu0 0.0
    %1431 = vmatpush2.msra.mxu0 0.0
    %1432 = vmatprep.mubr.f32.mxu0 0.0
    %1433 = vmatmul.mubr.f32.gmra.mxu0 %v1366
    %v1434 = vpop.f32.mrf.mxu0
    %v1435 = vadd.f32 0.0, %v1434
    %v1436 = vpop.f32.mrf.mxu0
    %1437 = vdwg.mxu0
    %1438 = vst.msk [vmem:[#allocation5] sm:$0xff] %vm1364, %v1435
    // Predicated region
    $region18: #{attention_block.1} parent=1 // pred_check
      _
    $region19: #{attention_block.1} parent=1 // pred_check_branch
      %1440 = sbr.rel (0) target = $region21
    $region20: #{attention_block.1} parent=1 // pred_region
      %s1442 = ssub.s32 128, 128
      %1443 = vsyncadd [#allocation6], %s1442
      %s1445 = sshll.u32 [#allocation5], 4
      %s1446 = int_to_ptr.vmem [resolvable:$true] %s1445
      %1448 = dma.vmem_to_hbm [thread:$0]  %s1446, 128, %s3, [#allocation6]
    $region21: #{attention_block.1} parent=1 // pred_fallthru
      _
    // Predicated region
    $region22: #{attention_block.1} parent=1 // pred_check
      _
    $region23: #{attention_block.1} parent=1 // pred_check_branch
      %1450 = sbr.rel (0) target = $region25
    $region24: #{attention_block.1} parent=1 // pred_region
      %1451 = dma.done [#allocation6], 128
    $region25: #{attention_block.1} parent=1 // pred_fallthru
      _
    %1452 = vsyncpa [#allocation6], 1

</llo_original>
